<compile_context>
chip_gen: v7x
topology: tpu7x:2x2x1
jax: 0.10.0
libtpu: 0.0.40
codegen_flags: <defaults>
</compile_context>

<pallas_src>
import functools

import jax
import jax.numpy as jnp
from jax import lax
from jax.experimental import pallas as pl
from jax.experimental.pallas import tpu as pltpu


def _round_up(x, m):
    return (x + m - 1) // m * m


def _vmem_capacity_bytes():
    """Physical VMEM per core; conservative 64 MiB (v7x) fallback."""
    try:
        fn = getattr(pltpu, "get_tpu_info", None)
        if fn is not None:
            cap = int(fn().vmem_capacity_bytes)
            if cap > 0:
                return cap
    except Exception:
        pass
    return 64 * 1024 * 1024


def _on_tpu():
    try:
        return jax.default_backend() == "tpu"
    except Exception:
        return False


def _hash_u32(x, seed_u32):
    """Counter-based 32-bit mixer ('lowbias32') — portable dropout PRNG fallback.

    Only plain jnp integer ops, so it lowers both on TPU and in interpret mode.
    TODO(synk): cannot bit-match torch's dropout RNG stream.
    """
    x = x ^ seed_u32
    x = (x ^ (x >> 16)) * jnp.uint32(0x7FEB352D)
    x = (x ^ (x >> 15)) * jnp.uint32(0x846CA68B)
    x = x ^ (x >> 16)
    return x


def _ffn_kernel(drop_prob, use_hw_prng, seed_ref,
                x_ref, w1_ref, b1_ref, w2_ref, b2_ref,
                o_ref, acc_ref):
    # Read grid coordinates at the TOP LEVEL only; the pl.when bodies below
    # capture them by closure (program_id inside a cond body has no
    # interpret-mode lowering — that was the previous failure).
    i = pl.program_id(0)
    k = pl.program_id(1)
    nk = pl.num_programs(1)

    @pl.when(k == 0)
    def _():
        acc_ref[...] = jnp.zeros_like(acc_ref)

    # Linear 1 (current hidden slab) + bias + ReLU, f32 accumulation on MXU.
    x = x_ref[...]
    h = jnp.dot(x, w1_ref[...], preferred_element_type=jnp.float32)
    h = jnp.maximum(h + b1_ref[...], 0.0)
    # Linear 2 partial product for this hidden slab, accumulated in f32.
    # h is cast back to the compute dtype so bf16 inputs feed the MXU at full
    # rate; f32 inputs stay f32.
    acc_ref[...] += jnp.dot(h.astype(x.dtype), w2_ref[...],
                            preferred_element_type=jnp.float32)

    @pl.when(k == nk - 1)
    def _():
        y = acc_ref[...] + b2_ref[...]
        if drop_prob >= 1.0:
            # torch.nn.Dropout(p=1.0) zeroes everything; avoid 1/(1-p)=inf.
            y = jnp.zeros_like(y)
        elif drop_prob > 0.0:
            tm, dn = y.shape
            if use_hw_prng:
                # Hardware PRNG: nearly free in the epilogue on real TPUs.
                pltpu.prng_seed(seed_ref[0] + i)
                raw = pltpu.prng_random_bits((tm, dn))
                bits = raw if raw.dtype == jnp.uint32 else pltpu.bitcast(raw, jnp.uint32)
            else:
                # Portable fallback: globally-unique per-element counter hash.
                row = lax.broadcasted_iota(jnp.int32, (tm, dn), 0)
                col = lax.broadcasted_iota(jnp.int32, (tm, dn), 1)
                gid = ((i * tm + row) * dn + col).astype(jnp.uint32)
                bits = _hash_u32(gid, seed_ref[0].astype(jnp.uint32))
            # Integer-domain keep test: top 23 bits vs p * 2^23.
            keep = (bits >> 9) >= jnp.uint32(int(drop_prob * (1 << 23)))
            y = jnp.where(keep, y * (1.0 / (1.0 - drop_prob)), 0.0)
        o_ref[...] = y.astype(o_ref.dtype)


def feed_forward(x, w1, b1, w2, b2, *, drop_prob=0.1, seed=0,
                 block_m=1024, block_h=2048, compute_dtype=None,
                 vmem_budget_bytes=None, use_hw_prng=None):
    """x: [B, S, d_model] -> [B, S, d_model].  w1: [d_model, hidden], w2: [hidden, d_model]."""
    B, S, d_model = x.shape
    hidden = w1.shape[1]
    M = B * S

    out_dtype = x.dtype
    cdt = jnp.dtype(compute_dtype) if compute_dtype is not None else jnp.dtype(x.dtype)
    citem = cdt.itemsize
    oitem = jnp.dtype(out_dtype).itemsize
    # Dtype-aware sublane rounding: f32 -> 8 rows, bf16 -> 16, int8/fp8 -> 32.
    sub = {4: 8, 2: 16, 1: 32}.get(citem, 8)

    if use_hw_prng is None:
        use_hw_prng = _on_tpu()

    cap = _vmem_capacity_bytes()
    if vmem_budget_bytes is None:
        # ~60% of physical VMEM (headroom for compiler scratch):
        # v7x ≈ 38 MiB of 64, v5e/v6e ≈ 77 MiB of 128.
        vmem_budget_bytes = min(int(0.6 * cap), 100 * 1024 * 1024)

    # Lane-dense feature padding (multiples of 128).
    dpad = _round_up(d_model, 128)
    hpad = _round_up(hidden, 128)

    # Roofline-sized M tile: weights are streamed once per M tile, so a larger
    # tm raises FLOPs per weight byte.
    tm = max(sub, min(block_m, _round_up(M, sub)))
    tm = _round_up(tm, sub)
    mpad = _round_up(M, tm)
    # Keep >= 2 blocks on the "parallel" M axis (v7x megacore) when there is
    # enough work to be worth splitting.
    if mpad // tm == 1 and mpad >= 512:
        tm = _round_up((mpad + 1) // 2, sub)
        mpad = _round_up(M, tm)

    def footprint(th_):
        w = 2 * 2 * dpad * th_ * citem      # w1 + w2 slabs, double-buffered
        xb = 2 * tm * dpad * citem          # x tile, double-buffered
        ob = 2 * tm * dpad * oitem          # out tile, double-buffered
        ab = tm * dpad * 4                  # f32 accumulator scratch
        bb = 2 * 2 * (hpad + dpad) * 4      # biases (f32)
        return w + xb + ob + ab + bb

    # If even the smallest hidden slab overflows the budget, shrink tm.
    while footprint(128) > vmem_budget_bytes and tm > sub:
        tm = _round_up(max(tm // 2, sub), sub)
        mpad = _round_up(M, tm)

    # Hidden-slab size: prefer fully-resident weights (th == hpad -> single k
    # step, w1/w2 DMA'd exactly once for the whole kernel); otherwise the
    # largest slab that fits the VMEM budget.
    cands = sorted({hpad} | {c for c in (block_h, 4096, 2048, 1024, 512, 256, 128)
                             if c < hpad and hpad % c == 0}, reverse=True)
    th = 128
    for c in cands:
        if footprint(c) <= vmem_budget_bytes:
            th = c
            break
    nk = hpad // th

    vmem_limit = int(min(0.9 * cap, max(footprint(th) * 1.25 + (4 << 20), 32 << 20)))

    def _pad2(a, r, c):
        return a if (r == 0 and c == 0) else jnp.pad(a, ((0, r), (0, c)))

    def _pad1(a, c):
        return a if c == 0 else jnp.pad(a, (0, c))

    # NOTE: in a real model the weight pad/cast below would be hoisted into a
    # one-time parameter-prep step instead of running every call.
    x2d = _pad2(x.reshape(M, d_model).astype(cdt), mpad - M, dpad - d_model)
    w1p = _pad2(w1.astype(cdt), dpad - d_model, hpad - hidden)
    w2p = _pad2(w2.astype(cdt), hpad - hidden, dpad - d_model)
    b1p = _pad1(b1.astype(jnp.float32), hpad - hidden).reshape(1, hpad)
    b2p = _pad1(b2.astype(jnp.float32), dpad - d_model).reshape(1, dpad)
    seed_arr = jnp.array([seed], dtype=jnp.int32)

    kernel = functools.partial(_ffn_kernel, float(drop_prob), bool(use_hw_prng))

    bytes_accessed = int(x2d.nbytes + w1p.nbytes + b1p.nbytes + w2p.nbytes
                         + b2p.nbytes + mpad * dpad * oitem)
    cost = pl.CostEstimate(flops=4 * M * d_model * hidden,
                           transcendentals=0,
                           bytes_accessed=bytes_accessed)

    out = pl.pallas_call(
        kernel,
        out_shape=jax.ShapeDtypeStruct((mpad, dpad), out_dtype),
        grid_spec=pltpu.PrefetchScalarGridSpec(
            num_scalar_prefetch=1,
            grid=(mpad // tm, nk),
            in_specs=[
                pl.BlockSpec((tm, dpad), lambda i, k, seed: (i, 0)),   # x tile
                pl.BlockSpec((dpad, th), lambda i, k, seed: (0, k)),   # w1 slab
                pl.BlockSpec((1, th),    lambda i, k, seed: (0, k)),   # b1 slab
                pl.BlockSpec((th, dpad), lambda i, k, seed: (k, 0)),   # w2 slab
                pl.BlockSpec((1, dpad),  lambda i, k, seed: (0, 0)),   # b2
            ],
            out_specs=pl.BlockSpec((tm, dpad), lambda i, k, seed: (i, 0)),
            scratch_shapes=[pltpu.VMEM((tm, dpad), jnp.float32)],
        ),
        compiler_params=pltpu.CompilerParams(
            dimension_semantics=("parallel", "arbitrary"),
            vmem_limit_bytes=vmem_limit,
        ),
        cost_estimate=cost,
    )(seed_arr, x2d, w1p, b1p, w2p, b2p)

    return out[:M, :d_model].reshape(B, S, d_model)


def _init_params(key, d_model, hidden, dtype=jnp.float32):
    """Deterministic init mimicking nn.Linear's uniform(-1/sqrt(fan_in), +)."""
    k1, k2, k3, k4 = jax.random.split(key, 4)
    lim1 = 1.0 / (d_model ** 0.5)
    lim2 = 1.0 / (hidden ** 0.5)
    w1 = jax.random.uniform(k1, (d_model, hidden), dtype, -lim1, lim1)
    b1 = jax.random.uniform(k2, (hidden,), dtype, -lim1, lim1)
    w2 = jax.random.uniform(k3, (hidden, d_model), dtype, -lim2, lim2)
    b2 = jax.random.uniform(k4, (d_model,), dtype, -lim2, lim2)
    return w1, b1, w2, b2


if __name__ == "__main__":
    key = jax.random.PRNGKey(0)
    kx, kp = jax.random.split(key)

    B, S, d_model, hidden = 2, 8, 32, 64
    x = jax.random.normal(kx, (B, S, d_model), jnp.float32)
    w1, b1, w2, b2 = _init_params(kp, d_model, hidden)

    # Reference (dropout disabled).
    h_ref = jnp.maximum(
        jnp.dot(x.reshape(-1, d_model), w1, precision="highest") + b1, 0.0)
    ref = (jnp.dot(h_ref, w2, precision="highest") + b2).reshape(B, S, d_model)

    # 1) Deterministic path, f32 compute, tight check.
    y_f32 = feed_forward(x, w1, b1, w2, b2, drop_prob=0.0)
    jax.block_until_ready(y_f32)
    assert jnp.allclose(y_f32, ref, atol=1e-3, rtol=1e-3), "f32 mismatch vs reference"

    # 2) bf16 compute path (the recommended perf path), looser tolerance.
    y_bf16 = feed_forward(x, w1, b1, w2, b2, drop_prob=0.0,
                          compute_dtype=jnp.bfloat16)
    jax.block_until_ready(y_bf16)
    assert y_bf16.shape == ref.shape
    assert jnp.allclose(y_bf16, ref, atol=5e-2, rtol=5e-2), "bf16 mismatch vs reference"

    # 3) Training-mode forward with dropout p=0.1.
    y = feed_forward(x, w1, b1, w2, b2, drop_prob=0.1, seed=42)
    jax.block_until_ready(y)
    assert y.shape == (B, S, d_model)
    assert bool(jnp.all(jnp.isfinite(y)))

    print("KERNEL_OK")
</pallas_src>

<mosaic_0001>
module attributes {stable_mosaic.version = 11 : i64} {
  func.func @_ffn_kernel(%arg0: i32, %arg1: i32, %arg2: memref<1xi32, #tpu.memory_space<smem>>, %arg3: memref<16x128xf32, #tpu.memory_space<vmem>>, %arg4: memref<128x128xf32, #tpu.memory_space<vmem>>, %arg5: memref<1x128xf32, #tpu.memory_space<vmem>>, %arg6: memref<128x128xf32, #tpu.memory_space<vmem>>, %arg7: memref<1x128xf32, #tpu.memory_space<vmem>>, %arg8: memref<16x128xf32, #tpu.memory_space<vmem>>, %arg9: memref<16x128xf32, #tpu.memory_space<vmem>>) attributes {dimension_semantics = [#tpu.dimension_semantics<parallel>, #tpu.dimension_semantics<arbitrary>], iteration_bounds = array<i64: 1, 1>, scalar_prefetch = 1 : i64, scratch_operands = 1 : i64, tpu.core_type = #tpu.core_type<tc>, window_params = [{transform_indices = @transform_0, window_bounds = array<i64: 16, 128>}, {transform_indices = @transform_1, window_bounds = array<i64: 128, 128>}, {transform_indices = @transform_2, window_bounds = array<i64: 1, 128>}, {transform_indices = @transform_3, window_bounds = array<i64: 128, 128>}, {pipeline_mode = #tpu.pipeline_mode<synchronous>, transform_indices = @transform_4, window_bounds = array<i64: 1, 128>}, {transform_indices = @transform_5, window_bounds = array<i64: 16, 128>}]} {
    %c0_i32 = arith.constant 0 : i32
    %0 = arith.cmpi eq, %arg1, %c0_i32 : i32
    %1 = arith.extui %0 : i1 to i32
    %c0_i32_0 = arith.constant 0 : i32
    %2 = arith.cmpi ne, %1, %c0_i32_0 : i32
    scf.if %2 {
      %cst_16 = arith.constant 0.000000e+00 : f32
      %19 = vector.broadcast %cst_16 : f32 to vector<16x128xf32>
      %c0_17 = arith.constant 0 : index
      %c0_18 = arith.constant 0 : index
      %20 = vector.load %arg9[%c0_17, %c0_18] : memref<16x128xf32, #tpu.memory_space<vmem>>, vector<16x128xf32>
      tpu.vector_store %arg9[%c0_17, %c0_18], %19 {strides = array<i32>} : memref<16x128xf32, #tpu.memory_space<vmem>>, vector<16x128xf32>,
    } else {
    }
    %c0 = arith.constant 0 : index
    %c0_1 = arith.constant 0 : index
    %3 = vector.load %arg3[%c0, %c0_1] : memref<16x128xf32, #tpu.memory_space<vmem>>, vector<16x128xf32>
    %c0_2 = arith.constant 0 : index
    %c0_3 = arith.constant 0 : index
    %4 = vector.load %arg4[%c0_2, %c0_3] : memref<128x128xf32, #tpu.memory_space<vmem>>, vector<128x128xf32>
    %cst = arith.constant dense<0.000000e+00> : vector<16x128xf32>
    %5 = tpu.matmul %3, %4, %cst {dimension_numbers = #tpu.dot_dimension_numbers<[1], [0], [0], [1], [0, 0, 1, 1], [], []>} : vector<16x128xf32>, vector<128x128xf32>, vector<16x128xf32> -> vector<16x128xf32>
    %c0_4 = arith.constant 0 : index
    %c0_5 = arith.constant 0 : index
    %6 = vector.load %arg5[%c0_4, %c0_5] : memref<1x128xf32, #tpu.memory_space<vmem>>, vector<1x128xf32>
    %7 = vector.broadcast %6 : vector<1x128xf32> to vector<16x128xf32>
    %8 = arith.addf %5, %7 : vector<16x128xf32>
    %cst_6 = arith.constant 0.000000e+00 : f32
    %9 = vector.broadcast %cst_6 : f32 to vector<16x128xf32>
    %10 = arith.maximumf %8, %9 : vector<16x128xf32>
    %c0_7 = arith.constant 0 : index
    %c0_8 = arith.constant 0 : index
    %11 = vector.load %arg9[%c0_7, %c0_8] : memref<16x128xf32, #tpu.memory_space<vmem>>, vector<16x128xf32>
    %c0_9 = arith.constant 0 : index
    %c0_10 = arith.constant 0 : index
    %12 = vector.load %arg6[%c0_9, %c0_10] : memref<128x128xf32, #tpu.memory_space<vmem>>, vector<128x128xf32>
    %cst_11 = arith.constant dense<0.000000e+00> : vector<16x128xf32>
    %13 = tpu.matmul %10, %12, %cst_11 {dimension_numbers = #tpu.dot_dimension_numbers<[1], [0], [0], [1], [0, 0, 1, 1], [], []>} : vector<16x128xf32>, vector<128x128xf32>, vector<16x128xf32> -> vector<16x128xf32>
    %14 = arith.addf %11, %13 : vector<16x128xf32>
    %c0_12 = arith.constant 0 : index
    %c0_13 = arith.constant 0 : index
    %15 = vector.load %arg9[%c0_12, %c0_13] : memref<16x128xf32, #tpu.memory_space<vmem>>, vector<16x128xf32>
    tpu.vector_store %arg9[%c0_12, %c0_13], %14 {strides = array<i32>} : memref<16x128xf32, #tpu.memory_space<vmem>>, vector<16x128xf32>,
    %c0_i32_14 = arith.constant 0 : i32
    %16 = arith.cmpi eq, %arg1, %c0_i32_14 : i32
    %17 = arith.extui %16 : i1 to i32
    %c0_i32_15 = arith.constant 0 : i32
    %18 = arith.cmpi ne, %17, %c0_i32_15 : i32
    scf.if %18 {
      %c0_16 = arith.constant 0 : index
      %c0_17 = arith.constant 0 : index
      %19 = vector.load %arg9[%c0_16, %c0_17] : memref<16x128xf32, #tpu.memory_space<vmem>>, vector<16x128xf32>
      %c0_18 = arith.constant 0 : index
      %c0_19 = arith.constant 0 : index
      %20 = vector.load %arg7[%c0_18, %c0_19] : memref<1x128xf32, #tpu.memory_space<vmem>>, vector<1x128xf32>
      %21 = vector.broadcast %20 : vector<1x128xf32> to vector<16x128xf32>
      %22 = arith.addf %19, %21 : vector<16x128xf32>
      %c0_20 = arith.constant 0 : index
      %c0_21 = arith.constant 0 : index
      %23 = vector.load %arg8[%c0_20, %c0_21] : memref<16x128xf32, #tpu.memory_space<vmem>>, vector<16x128xf32>
      tpu.vector_store %arg8[%c0_20, %c0_21], %22 {strides = array<i32>} : memref<16x128xf32, #tpu.memory_space<vmem>>, vector<16x128xf32>,
    } else {
    }
    return
  }
  func.func @transform_0(%arg0: i32, %arg1: i32, %arg2: memref<1xi32, #tpu.memory_space<smem>>) -> (i32, i32) {
    %c0_i32 = arith.constant 0 : i32
    %c0_i32_0 = arith.constant 0 : i32
    return %arg0, %c0_i32 : i32, i32
  }
  func.func @transform_1(%arg0: i32, %arg1: i32, %arg2: memref<1xi32, #tpu.memory_space<smem>>) -> (i32, i32) {
    %c0_i32 = arith.constant 0 : i32
    %c0_i32_0 = arith.constant 0 : i32
    return %c0_i32, %arg1 : i32, i32
  }
  func.func @transform_2(%arg0: i32, %arg1: i32, %arg2: memref<1xi32, #tpu.memory_space<smem>>) -> (i32, i32) {
    %c0_i32 = arith.constant 0 : i32
    %c0_i32_0 = arith.constant 0 : i32
    return %c0_i32, %arg1 : i32, i32
  }
  func.func @transform_3(%arg0: i32, %arg1: i32, %arg2: memref<1xi32, #tpu.memory_space<smem>>) -> (i32, i32) {
    %c0_i32 = arith.constant 0 : i32
    %c0_i32_0 = arith.constant 0 : i32
    return %arg1, %c0_i32 : i32, i32
  }
  func.func @transform_4(%arg0: i32, %arg1: i32, %arg2: memref<1xi32, #tpu.memory_space<smem>>) -> (i32, i32) {
    %c0_i32 = arith.constant 0 : i32
    %c0_i32_0 = arith.constant 0 : i32
    %c0_i32_1 = arith.constant 0 : i32
    return %c0_i32, %c0_i32_0 : i32, i32
  }
  func.func @transform_5(%arg0: i32, %arg1: i32, %arg2: memref<1xi32, #tpu.memory_space<smem>>) -> (i32, i32) {
    %c0_i32 = arith.constant 0 : i32
    %c0_i32_0 = arith.constant 0 : i32
    return %arg0, %c0_i32 : i32, i32
  }
}

</mosaic_0001>

<llo_original>
// kernel: tpu_custom_call.1
$region0: #{tpu_custom_call.1}
  #allocation0 [shape = 'u32[]', space=smem, size = 0x4, offset = 0x4, fixed_abs, tag = 'smem constant byte address 0x4 - core index']
  #allocation1 [shape = 'u32[144,128]{1,0:T(1,128)}', space=vmem, size = 0x12000, scoped, tag = 'internal scratch']
  #allocation2 [shape = 'f32[16,128]{1,0:T(8,128)}', space=vmem, size = 0x2000, scoped, tag = 'scratch operand']
  #allocation3 [shape = 's32[1]{0}', space=sflag, size = 0x4, scoped, tag = 'scoped memory for tpu_custom_call.1']
  #allocation4 [shape = 's32[1]{0:T(128)S(6)}', space=smem, size = 0x200, scoped, tag = 'prefetched SMEM operand 0']
  %s0 = inlined_call_operand.<no memory space> [shape: s32[1], index: 0, kind: input, shape index: {}]
  %s1 = inlined_call_operand.hbm [shape: f32[16,128], index: 1, kind: input, shape index: {}]
  %s2 = inlined_call_operand.hbm [shape: f32[128,128], index: 2, kind: input, shape index: {}]
  %s3 = inlined_call_operand.vmem [shape: f32[1,128], index: 3, kind: input, shape index: {}]
  %s4 = inlined_call_operand.hbm [shape: f32[128,128], index: 4, kind: input, shape index: {}]
  %s5 = inlined_call_operand.vmem [shape: f32[1,128], index: 5, kind: input, shape index: {}]
  %s6 = inlined_call_operand.hbm [shape: f32[16,128], index: 6, kind: output, shape index: {}]
  %s7 = sld [smem:[#allocation0]]
  $region50: #{tpu_custom_call.1} parent=0
    _
  %s9 = ssub.s32 1, %s7
  %s10 = scalar_select 0, %s9, %s7
  %11 = sst [smem:[#allocation4]] %s0
  $region1: #{tpu_custom_call.1} parent=0
    #allocation5 [shape = 'u8[8192]{0}', space=vmem, size = 0x2000, scoped, tag = 'input window, operand 1, single buffered']
    #allocation6 [shape = 's32[1]{0}', space=sflag, size = 0x4, scoped, tag = 'scoped memory for tpu_custom_call.1']
    #allocation7 [shape = 's32[1]{0}', space=sflag, size = 0x4, scoped, tag = 'scoped memory for tpu_custom_call.1']
    #allocation8 [shape = 'u8[65536]{0}', space=vmem, size = 0x10000, scoped, tag = 'input window, operand 2, single buffered']
    #allocation9 [shape = 's32[1]{0}', space=sflag, size = 0x4, scoped, tag = 'scoped memory for tpu_custom_call.1']
    #allocation10 [shape = 'u8[65536]{0}', space=vmem, size = 0x10000, scoped, tag = 'input window, operand 4, single buffered']
    #allocation11 [shape = 'u8[8192]{0}', space=vmem, size = 0x2000, scoped, tag = 'output window, operand 0, single buffered']
    %12 = vsyncpa [#allocation6], 0
    %13 = vsyncpa [#allocation9], 0
    %14 = vsyncpa [#allocation7], 0
    // Predicated region
    $region2: #{tpu_custom_call.1} parent=1 // pred_check
      _
    $region3: #{tpu_custom_call.1} parent=1 // pred_check_branch
      %16 = sbr.rel (0) target = $region5
    $region4: #{tpu_custom_call.1} parent=1 // pred_region
      %s18 = ssub.s32 256, 256
      %19 = vsyncadd [#allocation6], %s18
      %s20 = sshll.u32 [#allocation5], 4
      %s21 = int_to_ptr.vmem [resolvable:$true] %s20
      %26 = dma.hbm_to_vmem [thread:$0]  %s1, 256, %s21, [#allocation6], 128, 128, 8
    $region5: #{tpu_custom_call.1} parent=1 // pred_fallthru
      _
    // Predicated region
    $region6: #{tpu_custom_call.1} parent=1 // pred_check
      _
    $region7: #{tpu_custom_call.1} parent=1 // pred_check_branch
      %28 = sbr.rel (0) target = $region9
    $region8: #{tpu_custom_call.1} parent=1 // pred_region
      %s30 = ssub.s32 2048, 2048
      %31 = vsyncadd [#allocation9], %s30
      %s32 = sshll.u32 [#allocation8], 4
      %s33 = int_to_ptr.vmem [resolvable:$true] %s32
      %38 = dma.hbm_to_vmem [thread:$0]  %s2, 2048, %s33, [#allocation9], 128, 128, 8
    $region9: #{tpu_custom_call.1} parent=1 // pred_fallthru
      _
    // Predicated region
    $region10: #{tpu_custom_call.1} parent=1 // pred_check
      _
    $region11: #{tpu_custom_call.1} parent=1 // pred_check_branch
      %40 = sbr.rel (0) target = $region13
    $region12: #{tpu_custom_call.1} parent=1 // pred_region
      _
    $region13: #{tpu_custom_call.1} parent=1 // pred_fallthru
      _
    // Predicated region
    $region14: #{tpu_custom_call.1} parent=1 // pred_check
      _
    $region15: #{tpu_custom_call.1} parent=1 // pred_check_branch
      %42 = sbr.rel (0) target = $region17
    $region16: #{tpu_custom_call.1} parent=1 // pred_region
      %s44 = ssub.s32 2048, 2048
      %45 = vsyncadd [#allocation9], %s44
      %s46 = sshll.u32 [#allocation10], 4
      %s47 = int_to_ptr.vmem [resolvable:$true] %s46
      %52 = dma.hbm_to_vmem [thread:$0]  %s4, 2048, %s47, [#allocation9], 128, 128, 8
    $region17: #{tpu_custom_call.1} parent=1 // pred_fallthru
      _
    // Predicated region
    $region18: #{tpu_custom_call.1} parent=1 // pred_check
      _
    $region19: #{tpu_custom_call.1} parent=1 // pred_check_branch
      %54 = sbr.rel (0) target = $region21
    $region20: #{tpu_custom_call.1} parent=1 // pred_region
      _
    $region21: #{tpu_custom_call.1} parent=1 // pred_fallthru
      _
    // Predicated region
    $region22: #{tpu_custom_call.1} parent=1 // pred_check
      _
    $region23: #{tpu_custom_call.1} parent=1 // pred_check_branch
      %56 = sbr.rel (0) target = $region25
    $region24: #{tpu_custom_call.1} parent=1 // pred_region
      %57 = dma.done [#allocation6], 256
    $region25: #{tpu_custom_call.1} parent=1 // pred_fallthru
      _
    // Predicated region
    $region26: #{tpu_custom_call.1} parent=1 // pred_check
      _
    $region27: #{tpu_custom_call.1} parent=1 // pred_check_branch
      %59 = sbr.rel (0) target = $region29
    $region28: #{tpu_custom_call.1} parent=1 // pred_region
      %60 = dma.done [#allocation9], 2048
    $region29: #{tpu_custom_call.1} parent=1 // pred_fallthru
      _
    // Predicated region
    $region30: #{tpu_custom_call.1} parent=1 // pred_check
      _
    $region31: #{tpu_custom_call.1} parent=1 // pred_check_branch
      %62 = sbr.rel (0) target = $region33
    $region32: #{tpu_custom_call.1} parent=1 // pred_region
      %63 = dma.done [#allocation9], 2048
    $region33: #{tpu_custom_call.1} parent=1 // pred_fallthru
      _
    %p64 = scmp.eq.s32.totalorder 0, 0
    // Predicated region
    $region34: #{tpu_custom_call.1} parent=1 // pred_check
      %p65 = pneg %p64
    $region35: #{tpu_custom_call.1} parent=1 // pred_check_branch
      %67 = sbr.rel (%p65) target = $region37
    $region36: #{tpu_custom_call.1} parent=1 // pred_region
      %68 = vst [vmem:[#allocation2] sm:$0xff] 0.0
      %69 = vst [vmem:[#allocation2 + $0x8] sm:$0xff] 0.0
    $region37: #{tpu_custom_call.1} parent=1 // pred_fallthru
      _
    %v70 = vld [vmem:[#allocation5] sm:$0xff]
    %v71 = vld [vmem:[#allocation5 + $0x8] sm:$0xff]
    %v72 = vld [vmem:[#allocation8] sm:$0xff]
    %v73 = vld [vmem:[#allocation8 + $0x8] sm:$0xff]
    %v74 = vld [vmem:[#allocation8 + $0x10] sm:$0xff]
    %v75 = vld [vmem:[#allocation8 + $0x18] sm:$0xff]
    %v76 = vld [vmem:[#allocation8 + $0x20] sm:$0xff]
    %v77 = vld [vmem:[#allocation8 + $0x28] sm:$0xff]
    %v78 = vld [vmem:[#allocation8 + $0x30] sm:$0xff]
    %v79 = vld [vmem:[#allocation8 + $0x38] sm:$0xff]
    %v80 = vld [vmem:[#allocation8 + $0x40] sm:$0xff]
    %v81 = vld [vmem:[#allocation8 + $0x48] sm:$0xff]
    %v82 = vld [vmem:[#allocation8 + $0x50] sm:$0xff]
    %v83 = vld [vmem:[#allocation8 + $0x58] sm:$0xff]
    %v84 = vld [vmem:[#allocation8 + $0x60] sm:$0xff]
    %v85 = vld [vmem:[#allocation8 + $0x68] sm:$0xff]
    %v86 = vld [vmem:[#allocation8 + $0x70] sm:$0xff]
    %v87 = vld [vmem:[#allocation8 + $0x78] sm:$0xff]
    %v88 = vld [vmem:[%s3] sm:$0x1]
    %v90 = vlaneseq
    %v91 = vshrl.u32 %v90, 7
    %v92 = vsub.s32 0, %v91
    %v93 = vrot.slane %v88, %v92
    %95 = vmatprep.subr.mxu0 0.0
    %96 = vmatpush1.msra.mxu0 %v72
    %97 = vmatprep.subr.mxu0 0.0
    %98 = vmatpush1.msra.mxu0 %v73
    %99 = vmatprep.subr.mxu0 0.0
    %100 = vmatpush1.msra.mxu0 %v74
    %101 = vmatprep.subr.mxu0 0.0
    %102 = vmatpush1.msra.mxu0 %v75
    %103 = vmatprep.subr.mxu0 0.0
    %104 = vmatpush1.msra.mxu0 %v76
    %105 = vmatprep.subr.mxu0 0.0
    %106 = vmatpush1.msra.mxu0 %v77
    %107 = vmatprep.subr.mxu0 0.0
    %108 = vmatpush1.msra.mxu0 %v78
    %109 = vmatprep.subr.mxu0 0.0
    %110 = vmatpush1.msra.mxu0 %v79
    %111 = vmatprep.subr.mxu0 0.0
    %112 = vmatpush1.msra.mxu0 %v80
    %113 = vmatprep.subr.mxu0 0.0
    %114 = vmatpush1.msra.mxu0 %v81
    %115 = vmatprep.subr.mxu0 0.0
    %116 = vmatpush1.msra.mxu0 %v82
    %117 = vmatprep.subr.mxu0 0.0
    %118 = vmatpush1.msra.mxu0 %v83
    %119 = vmatprep.subr.mxu0 0.0
    %120 = vmatpush1.msra.mxu0 %v84
    %121 = vmatprep.subr.mxu0 0.0
    %122 = vmatpush1.msra.mxu0 %v85
    %123 = vmatprep.subr.mxu0 0.0
    %124 = vmatpush1.msra.mxu0 %v86
    %125 = vmatprep.subr.mxu0 0.0
    %126 = vmatpush1.msra.mxu0 %v87
    %127 = vmatprep.subr.mxu0 0.0
    %128 = vmatpush1.msra.mxu0 0.0
    %129 = vmatprep.subr.mxu0 0.0
    %130 = vmatpush1.msra.mxu0 0.0
    %131 = vmatprep.subr.mxu0 0.0
    %132 = vmatpush1.msra.mxu0 0.0
    %133 = vmatprep.subr.mxu0 0.0
    %134 = vmatpush1.msra.mxu0 0.0
    %135 = vmatprep.subr.mxu0 0.0
    %136 = vmatpush1.msra.mxu0 0.0
    %137 = vmatprep.subr.mxu0 0.0
    %138 = vmatpush1.msra.mxu0 0.0
    %139 = vmatprep.subr.mxu0 0.0
    %140 = vmatpush1.msra.mxu0 0.0
    %141 = vmatprep.subr.mxu0 0.0
    %142 = vmatpush1.msra.mxu0 0.0
    %143 = vmatprep.subr.mxu0 0.0
    %144 = vmatpush1.msra.mxu0 0.0
    %145 = vmatprep.subr.mxu0 0.0
    %146 = vmatpush1.msra.mxu0 0.0
    %147 = vmatprep.subr.mxu0 0.0
    %148 = vmatpush1.msra.mxu0 0.0
    %149 = vmatprep.subr.mxu0 0.0
    %150 = vmatpush1.msra.mxu0 0.0
    %151 = vmatprep.subr.mxu0 0.0
    %152 = vmatpush1.msra.mxu0 0.0
    %153 = vmatprep.subr.mxu0 0.0
    %154 = vmatpush1.msra.mxu0 0.0
    %155 = vmatprep.subr.mxu0 0.0
    %156 = vmatpush1.msra.mxu0 0.0
    %157 = vmatprep.subr.mxu0 0.0
    %158 = vmatpush1.msra.mxu0 0.0
    %159 = vmatprep.mubr.f32.mxu0 0.0
    %160 = vmatmul.mubr.f32.gmra.mrb[0].mxu0 %v70
    %v161 = vpop.f32.mrb[0].mxu0
    %v162 = vadd.f32 %v93, %v161
    %v163 = vpop.f32.mrb[0].mxu0
    %164 = vmatprep.mubr.f32.mxu0 0.0
    %165 = vmatmul.mubr.f32.gmra.mrb[0].mxu0 %v71
    %v166 = vpop.f32.mrb[0].mxu0
    %v167 = vadd.f32 %v93, %v166
    %v168 = vpop.f32.mrb[0].mxu0
    %169 = vdwg.mxu0
    %v170 = vmax.f32 %v162, 0.0
    %v171 = vmax.f32 %v167, 0.0
    %v172 = vld [vmem:[#allocation2] sm:$0xff]
    %v173 = vld [vmem:[#allocation2 + $0x8] sm:$0xff]
    %v174 = vld [vmem:[#allocation10] sm:$0xff]
    %v175 = vld [vmem:[#allocation10 + $0x8] sm:$0xff]
    %v176 = vld [vmem:[#allocation10 + $0x10] sm:$0xff]
    %v177 = vld [vmem:[#allocation10 + $0x18] sm:$0xff]
    %v178 = vld [vmem:[#allocation10 + $0x20] sm:$0xff]
    %v179 = vld [vmem:[#allocation10 + $0x28] sm:$0xff]
    %v180 = vld [vmem:[#allocation10 + $0x30] sm:$0xff]
    %v181 = vld [vmem:[#allocation10 + $0x38] sm:$0xff]
    %v182 = vld [vmem:[#allocation10 + $0x40] sm:$0xff]
    %v183 = vld [vmem:[#allocation10 + $0x48] sm:$0xff]
    %v184 = vld [vmem:[#allocation10 + $0x50] sm:$0xff]
    %v185 = vld [vmem:[#allocation10 + $0x58] sm:$0xff]
    %v186 = vld [vmem:[#allocation10 + $0x60] sm:$0xff]
    %v187 = vld [vmem:[#allocation10 + $0x68] sm:$0xff]
    %v188 = vld [vmem:[#allocation10 + $0x70] sm:$0xff]
    %v189 = vld [vmem:[#allocation10 + $0x78] sm:$0xff]
    %190 = vmatprep.subr.mxu0 0.0
    %191 = vmatpush1.msra.mxu0 %v174
    %192 = vmatprep.subr.mxu0 0.0
    %193 = vmatpush1.msra.mxu0 %v175
    %194 = vmatprep.subr.mxu0 0.0
    %195 = vmatpush1.msra.mxu0 %v176
    %196 = vmatprep.subr.mxu0 0.0
    %197 = vmatpush1.msra.mxu0 %v177
    %198 = vmatprep.subr.mxu0 0.0
    %199 = vmatpush1.msra.mxu0 %v178
    %200 = vmatprep.subr.mxu0 0.0
    %201 = vmatpush1.msra.mxu0 %v179
    %202 = vmatprep.subr.mxu0 0.0
    %203 = vmatpush1.msra.mxu0 %v180
    %204 = vmatprep.subr.mxu0 0.0
    %205 = vmatpush1.msra.mxu0 %v181
    %206 = vmatprep.subr.mxu0 0.0
    %207 = vmatpush1.msra.mxu0 %v182
    %208 = vmatprep.subr.mxu0 0.0
    %209 = vmatpush1.msra.mxu0 %v183
    %210 = vmatprep.subr.mxu0 0.0
    %211 = vmatpush1.msra.mxu0 %v184
    %212 = vmatprep.subr.mxu0 0.0
    %213 = vmatpush1.msra.mxu0 %v185
    %214 = vmatprep.subr.mxu0 0.0
    %215 = vmatpush1.msra.mxu0 %v186
    %216 = vmatprep.subr.mxu0 0.0
    %217 = vmatpush1.msra.mxu0 %v187
    %218 = vmatprep.subr.mxu0 0.0
    %219 = vmatpush1.msra.mxu0 %v188
    %220 = vmatprep.subr.mxu0 0.0
    %221 = vmatpush1.msra.mxu0 %v189
    %222 = vmatprep.subr.mxu0 0.0
    %223 = vmatpush1.msra.mxu0 0.0
    %224 = vmatprep.subr.mxu0 0.0
    %225 = vmatpush1.msra.mxu0 0.0
    %226 = vmatprep.subr.mxu0 0.0
    %227 = vmatpush1.msra.mxu0 0.0
    %228 = vmatprep.subr.mxu0 0.0
    %229 = vmatpush1.msra.mxu0 0.0
    %230 = vmatprep.subr.mxu0 0.0
    %231 = vmatpush1.msra.mxu0 0.0
    %232 = vmatprep.subr.mxu0 0.0
    %233 = vmatpush1.msra.mxu0 0.0
    %234 = vmatprep.subr.mxu0 0.0
    %235 = vmatpush1.msra.mxu0 0.0
    %236 = vmatprep.subr.mxu0 0.0
    %237 = vmatpush1.msra.mxu0 0.0
    %238 = vmatprep.subr.mxu0 0.0
    %239 = vmatpush1.msra.mxu0 0.0
    %240 = vmatprep.subr.mxu0 0.0
    %241 = vmatpush1.msra.mxu0 0.0
    %242 = vmatprep.subr.mxu0 0.0
    %243 = vmatpush1.msra.mxu0 0.0
    %244 = vmatprep.subr.mxu0 0.0
    %245 = vmatpush1.msra.mxu0 0.0
    %246 = vmatprep.subr.mxu0 0.0
    %247 = vmatpush1.msra.mxu0 0.0
    %248 = vmatprep.subr.mxu0 0.0
    %249 = vmatpush1.msra.mxu0 0.0
    %250 = vmatprep.subr.mxu0 0.0
    %251 = vmatpush1.msra.mxu0 0.0
    %252 = vmatprep.subr.mxu0 0.0
    %253 = vmatpush1.msra.mxu0 0.0
    %254 = vmatprep.mubr.f32.mxu0 0.0
    %255 = vmatmul.mubr.f32.gmra.mrb[0].mxu0 %v170
    %v256 = vpop.f32.mrb[0].mxu0
    %v257 = vadd.f32 0.0, %v256
    %v258 = vpop.f32.mrb[0].mxu0
    %259 = vmatprep.mubr.f32.mxu0 0.0
    %260 = vmatmul.mubr.f32.gmra.mrb[0].mxu0 %v171
    %v261 = vpop.f32.mrb[0].mxu0
    %v262 = vadd.f32 0.0, %v261
    %v263 = vpop.f32.mrb[0].mxu0
    %264 = vdwg.mxu0
    %v265 = vadd.f32 %v172, %v257
    %v266 = vadd.f32 %v173, %v262
    %267 = vst [vmem:[#allocation2] sm:$0xff] %v265
    %268 = vst [vmem:[#allocation2 + $0x8] sm:$0xff] %v266
    // Predicated region
    $region38: #{tpu_custom_call.1} parent=1 // pred_check
      %p269 = pneg %p64
    $region39: #{tpu_custom_call.1} parent=1 // pred_check_branch
      %271 = sbr.rel (%p269) target = $region41
    $region40: #{tpu_custom_call.1} parent=1 // pred_region
      %v272 = vld [vmem:[#allocation2] sm:$0xff]
      %v273 = vld [vmem:[#allocation2 + $0x8] sm:$0xff]
      %v274 = vld [vmem:[%s5] sm:$0x1]
      %v276 = vlaneseq
      %v277 = vshrl.u32 %v276, 7
      %v278 = vsub.s32 0, %v277
      %v279 = vrot.slane %v274, %v278
      %v281 = vadd.f32 %v272, %v279
      %v282 = vadd.f32 %v273, %v279
      %283 = vst [vmem:[#allocation11] sm:$0xff] %v281
      %284 = vst [vmem:[#allocation11 + $0x8] sm:$0xff] %v282
    $region41: #{tpu_custom_call.1} parent=1 // pred_fallthru
      _
    // Predicated region
    $region42: #{tpu_custom_call.1} parent=1 // pred_check
      _
    $region43: #{tpu_custom_call.1} parent=1 // pred_check_branch
      %286 = sbr.rel (0) target = $region45
    $region44: #{tpu_custom_call.1} parent=1 // pred_region
      %s288 = ssub.s32 256, 256
      %289 = vsyncadd [#allocation7], %s288
      %s290 = sshll.u32 [#allocation11], 4
      %s291 = int_to_ptr.vmem [resolvable:$true] %s290
      %296 = dma.vmem_to_hbm [thread:$0]  %s291, 256, %s6, [#allocation7], 128, 128, 8
    $region45: #{tpu_custom_call.1} parent=1 // pred_fallthru
      _
    // Predicated region
    $region46: #{tpu_custom_call.1} parent=1 // pred_check
      _
    $region47: #{tpu_custom_call.1} parent=1 // pred_check_branch
      %298 = sbr.rel (0) target = $region49
    $region48: #{tpu_custom_call.1} parent=1 // pred_region
      %299 = dma.done [#allocation7], 256
    $region49: #{tpu_custom_call.1} parent=1 // pred_fallthru
      _
    %300 = vsyncpa [#allocation6], 1
    %301 = vsyncpa [#allocation9], 1
    %302 = vsyncpa [#allocation7], 1

</llo_original>
